<compile_context>
chip_gen: v7x
topology: tpu7x:2x2x1
jax: 0.10.0
libtpu: 0.0.40
codegen_flags: <defaults>
</compile_context>

<pallas_src>
import functools

import jax
import jax.numpy as jnp
from jax import lax
from jax.experimental import pallas as pl
from jax.experimental.pallas import tpu as pltpu

EPS = 1e-5


# --------------------------- Pallas kernel 1: matmul+bias+relu ---------------------------
def _matmul_bias_relu_kernel(a_ref, w_ref, b_ref, o_ref):
    # a: (tm, K) bf16   w: (K, N) bf16 (BN scale pre-folded)   b: (1, N) f32
    acc = jnp.dot(a_ref[...], w_ref[...], preferred_element_type=jnp.float32)
    o_ref[...] = jnp.maximum(acc + b_ref[...], 0.0).astype(o_ref.dtype)


def _pick_tm(m, *, max_tm=1024, min_steps=2):
    # min_steps=2: enough to occupy both v7x TensorCores; on single-TC v5e/v6e two
    # large tiles are near the HBM roofline (per-step overhead ~0.35us amortized).
    # tm is sized to ceil(M/steps) rounded up to 128 (not power-of-2 halving).
    steps = max(min_steps, pl.cdiv(m, max_tm))
    tm = pl.cdiv(pl.cdiv(m, steps), 128) * 128
    return int(max(128, min(max_tm, tm)))


def fused_matmul_bias_relu(a_bf16, w, bias, out_dtype=jnp.bfloat16):
    """relu(a @ w + bias).  a:(M,K) bf16, w:(K,N), bias:(N,) -> (M,N) out_dtype."""
    M, K = a_bf16.shape
    N = w.shape[1]
    tm = _pick_tm(M)
    Mp = pl.cdiv(M, tm) * tm
    if Mp != M:  # not triggered at the shapes used here (512 % 256 == 0)
        a_bf16 = jnp.pad(a_bf16, ((0, Mp - M), (0, 0)))
    w_bf = w.astype(jnp.bfloat16)
    bias2d = bias.reshape(1, N).astype(jnp.float32)

    out_bytes = jnp.dtype(out_dtype).itemsize
    cost = pl.CostEstimate(
        flops=2 * Mp * K * N,
        transcendentals=0,
        bytes_accessed=Mp * K * 2 + K * N * 2 + N * 4 + Mp * N * out_bytes,
    )
    out = pl.pallas_call(
        _matmul_bias_relu_kernel,
        out_shape=jax.ShapeDtypeStruct((Mp, N), out_dtype),
        grid=(Mp // tm,),
        in_specs=[
            pl.BlockSpec((tm, K), lambda i: (i, 0)),
            pl.BlockSpec((K, N), lambda i: (0, 0)),
            pl.BlockSpec((1, N), lambda i: (0, 0)),
        ],
        out_specs=pl.BlockSpec((tm, N), lambda i: (i, 0)),
        compiler_params=pltpu.CompilerParams(
            dimension_semantics=("parallel",),
            vmem_limit_bytes=32 * 1024 * 1024,
        ),
        cost_estimate=cost,
    )(a_bf16, w_bf, bias2d)
    return out[:M] if Mp != M else out


# ------------------- Pallas kernel 2: fused sub-pixel ConvTranspose + BN + ReLU -------------------
def _convtr_subpixel_kernel(x_ref, w_ref, b_ref, o_ref, acc_ref, *, wpad, m2p):
    # x_ref: (1, R, C) bf16  -- one image's conv1 output, spatially 1-padded and
    #                            row-major flattened over (row, col).
    # w_ref: (4, C, 4C) bf16 -- tap-major (dy,dx) phase-concatenated weights, BN folded.
    # b_ref: (1, 4C) f32      o_ref: (1, m2p, 4C) f32      acc_ref: (m2p, 4C) f32 scratch.
    #
    # The 4 tap views of the im2col are just row-shifted contiguous slabs of the flat
    # buffer (the per-row wrap entries produce garbage rows that the wrapper discards),
    # so no im2col is ever materialized in HBM.
    for t, (dy, dx) in enumerate(((0, 0), (0, 1), (1, 0), (1, 1))):
        r0 = dy * wpad + dx
        a = x_ref[0, pl.ds(r0, m2p), :]
        part = jnp.dot(a, w_ref[t], preferred_element_type=jnp.float32)
        if t == 0:
            acc_ref[...] = part
        else:
            acc_ref[...] += part
    o_ref[0] = jnp.maximum(acc_ref[...] + b_ref[...], 0.0)


def convtr_bn_relu(x1_nhwc_bf16, wt, s2, sh2):
    """ConvTranspose2d(128,128,4,s=2,p=1) + BN + ReLU via exact sub-pixel decomposition.

      out[:, 2m+a, 2q+b, o] = sum_{dy,dx in {0,1}} xp[:, m+a+dy, q+b+dx, :]
                              @ wt[:, o, 3-a-2dy, 3-b-2dx],   xp = pad(x1, 1)
    """
    n, h, w, c = x1_nhwc_bf16.shape
    # tap-major weights, each (C, 4*C): columns are the 4 output phases (p = 2a+b),
    # BN scale folded into the columns.
    taps = []
    for dy in range(2):
        for dx in range(2):
            cols = [wt[:, :, 3 - a - 2 * dy, 3 - b - 2 * dx] * s2[None, :]
                    for a in range(2) for b in range(2)]
            taps.append(jnp.concatenate(cols, axis=1))             # (c, 4c)
    w2 = jnp.stack(taps, axis=0).astype(jnp.bfloat16)              # (4, c, 4c)
    bias2 = jnp.tile(sh2, 4).reshape(1, 4 * c).astype(jnp.float32)

    wpad = w + 2
    m2 = (h + 1) * wpad                    # valid phase-grid rows
    m2p = pl.cdiv(m2, 8) * 8               # sublane-aligned slab length
    # pad top/left/right by 1 (the decomposition's zero ring) and bottom by 2 so the
    # wrap-around slab of the (dy=1,dx=1) tap stays in range; then flatten rows.
    xp = jnp.pad(x1_nhwc_bf16, ((0, 0), (1, 2), (1, 1), (0, 0)))
    X = xp.reshape(n, (h + 3) * wpad, c)
    need = (wpad + 1) + m2p
    if X.shape[1] < need:                  # not triggered for w >= 7
        X = jnp.pad(X, ((0, 0), (0, need - X.shape[1]), (0, 0)))
    R = X.shape[1]

    kern = functools.partial(_convtr_subpixel_kernel, wpad=wpad, m2p=m2p)
    cost = pl.CostEstimate(
        flops=2 * n * 4 * m2p * c * (4 * c),
        transcendentals=0,
        bytes_accessed=n * R * c * 2 + 4 * c * 4 * c * 2 + 4 * c * 4 + n * m2p * 4 * c * 4,
    )
    y = pl.pallas_call(
        kern,
        out_shape=jax.ShapeDtypeStruct((n, m2p, 4 * c), jnp.float32),
        grid=(n,),
        in_specs=[
            pl.BlockSpec((1, R, c), lambda i: (i, 0, 0)),
            pl.BlockSpec((4, c, 4 * c), lambda i: (0, 0, 0)),
            pl.BlockSpec((1, 4 * c), lambda i: (0, 0)),
        ],
        out_specs=pl.BlockSpec((1, m2p, 4 * c), lambda i: (i, 0, 0)),
        scratch_shapes=[pltpu.VMEM((m2p, 4 * c), jnp.float32)],
        compiler_params=pltpu.CompilerParams(
            dimension_semantics=("parallel",),
            vmem_limit_bytes=32 * 1024 * 1024,
        ),
        cost_estimate=cost,
    )(X, w2, bias2)

    # Phase interleave + NCHW in one gather pass + ONE transpose:
    #   out[n, c, 2m+a, 2q+b] = y[n, m+a, q+b, 2a+b, c]
    y = y[:, :m2, :].reshape(n, h + 1, wpad, 4, c)
    rows = []
    for a in range(2):
        cols = [y[:, a:a + h, b:b + w, 2 * a + b, :] for b in range(2)]
        rows.append(jnp.stack(cols, axis=3))          # (n, h, w, 2, c)
    out = jnp.stack(rows, axis=2)                     # (n, h, 2, w, 2, c)
    return out.transpose(0, 5, 1, 2, 3, 4).reshape(n, c, 2 * h, 2 * w)


# ------------------------------ JAX glue -------------------------------------
def _im2col(x_pad, k, oh, ow):
    """x_pad: (N, Hp, Wp, C) -> (N*oh*ow, k*k*C), patch order (ky, kx, c)."""
    nb = x_pad.shape[0]
    c = x_pad.shape[-1]
    cols = [x_pad[:, ky:ky + oh, kx:kx + ow, :]
            for ky in range(k) for kx in range(k)]
    patches = jnp.stack(cols, axis=3)                 # (N, oh, ow, k*k, C)
    return patches.reshape(nb * oh * ow, k * k * c)


def _fold_bn(gamma, beta, mean, var, conv_bias):
    s = gamma / jnp.sqrt(var + EPS)
    shift = (conv_bias - mean) * s + beta
    return s, shift


def broadcast_add_forward(x_nchw, params):
    n, cin, h, w = x_nchw.shape
    x = jnp.transpose(x_nchw, (0, 2, 3, 1)).astype(jnp.bfloat16)          # NHWC

    # --- conv1: 3x3, stride 1, pad 1, + BN + ReLU (fused matmul, bf16 out) ---
    s1, sh1 = _fold_bn(params["bn_a_g"], params["bn_a_b"],
                       params["bn_a_m"], params["bn_a_v"], params["b1"])
    co = params["w1"].shape[-1]                                           # 128
    k1 = 9 * cin                                                          # 27
    kp = pl.cdiv(k1, 8) * 8                                               # 32 (not 128)
    w1f = params["w1"].reshape(k1, co) * s1[None, :]                      # fold BN scale
    w1p = jnp.zeros((kp, co), jnp.float32).at[:k1, :].set(w1f)
    x_pad = jnp.pad(x, ((0, 0), (1, 1), (1, 1), (0, 0)))
    a1 = _im2col(x_pad, 3, h, w)                                          # (N*H*W, 27) bf16
    a1 = jnp.pad(a1, ((0, 0), (0, kp - k1)))
    x1 = fused_matmul_bias_relu(a1, w1p, sh1,
                                out_dtype=jnp.bfloat16).reshape(n, h, w, co)

    # --- conv_tr: ConvTranspose2d(128,128,4,stride=2,pad=1) + BN + ReLU (fused) ---
    s2, sh2 = _fold_bn(params["bn1_g"], params["bn1_b"],
                       params["bn1_m"], params["bn1_v"], params["bt"])
    return convtr_bn_relu(x1, params["wt"], s2, sh2)                      # (N,128,2H,2W) f32


# ---------------------------- pure-JAX f32 reference --------------------------
def reference_forward(x_nchw, params):
    n, cin, h, w = x_nchw.shape
    x = jnp.transpose(x_nchw, (0, 2, 3, 1))
    # conv1 + BN + ReLU
    y = lax.conv_general_dilated(x, params["w1"], (1, 1), ((1, 1), (1, 1)),
                                 dimension_numbers=("NHWC", "HWIO", "NHWC"))
    y = y + params["b1"]
    s = params["bn_a_g"] / jnp.sqrt(params["bn_a_v"] + EPS)
    y = jnp.maximum((y - params["bn_a_m"]) * s + params["bn_a_b"], 0.0)
    # conv transpose (direct scatter definition, matches PyTorch exactly)
    wt = params["wt"]                                                     # (I,O,kH,kW)
    oh, ow = 2 * h, 2 * w
    big = jnp.zeros((n, oh + 2, ow + 2, 128), jnp.float32)
    for ky in range(4):
        for kx in range(4):
            contrib = jnp.einsum("nhwi,io->nhwo", y, wt[:, :, ky, kx])
            big = big.at[:, ky:ky + 2 * h - 1:2, kx:kx + 2 * w - 1:2, :].add(contrib)
    z = big[:, 1:oh + 1, 1:ow + 1, :] + params["bt"]
    s2 = params["bn1_g"] / jnp.sqrt(params["bn1_v"] + EPS)
    z = jnp.maximum((z - params["bn1_m"]) * s2 + params["bn1_b"], 0.0)
    return jnp.transpose(z, (0, 3, 1, 2))


# ---------------------------------- main --------------------------------------
def make_params(key):
    ks = jax.random.split(key, 12)
    f32 = jnp.float32
    return {
        "w1": (jax.random.normal(ks[0], (3, 3, 3, 128), f32) * 0.1),      # HWIO
        "b1": (jax.random.normal(ks[1], (128,), f32) * 0.1),
        "bn_a_g": jax.random.uniform(ks[2], (128,), f32, 0.5, 1.5),
        "bn_a_b": (jax.random.normal(ks[3], (128,), f32) * 0.1),
        "bn_a_m": (jax.random.normal(ks[4], (128,), f32) * 0.1),
        "bn_a_v": jax.random.uniform(ks[5], (128,), f32, 0.5, 1.5),
        "wt": (jax.random.normal(ks[6], (128, 128, 4, 4), f32) * 0.05),   # (in,out,kh,kw)
        "bt": (jax.random.normal(ks[7], (128,), f32) * 0.1),
        "bn1_g": jax.random.uniform(ks[8], (128,), f32, 0.5, 1.5),
        "bn1_b": (jax.random.normal(ks[9], (128,), f32) * 0.1),
        "bn1_m": (jax.random.normal(ks[10], (128,), f32) * 0.1),
        "bn1_v": jax.random.uniform(ks[11], (128,), f32, 0.5, 1.5),
    }


if __name__ == "__main__":
    key = jax.random.PRNGKey(0)
    k_x, k_p = jax.random.split(key)
    x = jax.random.normal(k_x, (2, 3, 16, 16), jnp.float32)               # NCHW input
    params = make_params(k_p)

    out = jax.jit(broadcast_add_forward)(x, params)
    out = jax.block_until_ready(out)
    assert out.shape == (2, 128, 32, 32), out.shape

    ref = jax.block_until_ready(reference_forward(x, params))
    # bf16 MXU inputs with f32 accumulation: allow bf16 rounding noise only.
    err = float(jnp.max(jnp.abs(out - ref)) / (jnp.max(jnp.abs(ref)) + 1e-6))
    assert err < 2e-2, f"mismatch vs reference: rel err {err}"

    print("KERNEL_OK")
</pallas_src>

<mosaic_0001>
module attributes {stable_mosaic.version = 11 : i64} {
  func.func @_matmul_bias_relu_kernel(%arg0: i32, %arg1: memref<256x32xbf16, #tpu.memory_space<vmem>>, %arg2: memref<32x128xbf16, #tpu.memory_space<vmem>>, %arg3: memref<1x128xf32, #tpu.memory_space<vmem>>, %arg4: memref<256x128xbf16, #tpu.memory_space<vmem>>) attributes {dimension_semantics = [#tpu.dimension_semantics<parallel>], iteration_bounds = array<i64: 2>, scalar_prefetch = 0 : i64, scratch_operands = 0 : i64, tpu.core_type = #tpu.core_type<tc>, window_params = [{transform_indices = @transform_0, window_bounds = array<i64: 256, 32>}, {pipeline_mode = #tpu.pipeline_mode<synchronous>, transform_indices = @transform_1, window_bounds = array<i64: 32, 128>}, {pipeline_mode = #tpu.pipeline_mode<synchronous>, transform_indices = @transform_2, window_bounds = array<i64: 1, 128>}, {transform_indices = @transform_3, window_bounds = array<i64: 256, 128>}]} {
    %c0 = arith.constant 0 : index
    %c0_0 = arith.constant 0 : index
    %0 = vector.load %arg1[%c0, %c0_0] : memref<256x32xbf16, #tpu.memory_space<vmem>>, vector<256x32xbf16>
    %c0_1 = arith.constant 0 : index
    %c0_2 = arith.constant 0 : index
    %1 = vector.load %arg2[%c0_1, %c0_2] : memref<32x128xbf16, #tpu.memory_space<vmem>>, vector<32x128xbf16>
    %cst = arith.constant dense<0.000000e+00> : vector<256x128xf32>
    %2 = tpu.matmul %0, %1, %cst {dimension_numbers = #tpu.dot_dimension_numbers<[1], [0], [0], [1], [0, 0, 1, 1], [], []>} : vector<256x32xbf16>, vector<32x128xbf16>, vector<256x128xf32> -> vector<256x128xf32>
    %c0_3 = arith.constant 0 : index
    %c0_4 = arith.constant 0 : index
    %3 = vector.load %arg3[%c0_3, %c0_4] : memref<1x128xf32, #tpu.memory_space<vmem>>, vector<1x128xf32>
    %4 = vector.broadcast %3 : vector<1x128xf32> to vector<256x128xf32>
    %5 = arith.addf %2, %4 : vector<256x128xf32>
    %cst_5 = arith.constant 0.000000e+00 : f32
    %6 = vector.broadcast %cst_5 : f32 to vector<256x128xf32>
    %7 = arith.maximumf %5, %6 : vector<256x128xf32>
    %8 = arith.truncf %7 : vector<256x128xf32> to vector<256x128xbf16>
    %c0_6 = arith.constant 0 : index
    %c0_7 = arith.constant 0 : index
    %9 = vector.load %arg4[%c0_6, %c0_7] : memref<256x128xbf16, #tpu.memory_space<vmem>>, vector<256x128xbf16>
    tpu.vector_store %arg4[%c0_6, %c0_7], %8 {strides = array<i32>} : memref<256x128xbf16, #tpu.memory_space<vmem>>, vector<256x128xbf16>,
    return
  }
  func.func @transform_0(%arg0: i32) -> (i32, i32) {
    %c0_i32 = arith.constant 0 : i32
    %c0_i32_0 = arith.constant 0 : i32
    return %arg0, %c0_i32 : i32, i32
  }
  func.func @transform_1(%arg0: i32) -> (i32, i32) {
    %c0_i32 = arith.constant 0 : i32
    %c0_i32_0 = arith.constant 0 : i32
    %c0_i32_1 = arith.constant 0 : i32
    return %c0_i32, %c0_i32_0 : i32, i32
  }
  func.func @transform_2(%arg0: i32) -> (i32, i32) {
    %c0_i32 = arith.constant 0 : i32
    %c0_i32_0 = arith.constant 0 : i32
    %c0_i32_1 = arith.constant 0 : i32
    return %c0_i32, %c0_i32_0 : i32, i32
  }
  func.func @transform_3(%arg0: i32) -> (i32, i32) {
    %c0_i32 = arith.constant 0 : i32
    %c0_i32_0 = arith.constant 0 : i32
    return %arg0, %c0_i32 : i32, i32
  }
}

module attributes {stable_mosaic.version = 11 : i64} {
  func.func @_convtr_subpixel_kernel(%arg0: i32, %arg1: memref<1x342x128xbf16, #tpu.memory_space<vmem>>, %arg2: memref<4x128x512xbf16, #tpu.memory_space<vmem>>, %arg3: memref<1x512xf32, #tpu.memory_space<vmem>>, %arg4: memref<1x312x512xf32, #tpu.memory_space<vmem>>, %arg5: memref<312x512xf32, #tpu.memory_space<vmem>>) attributes {dimension_semantics = [#tpu.dimension_semantics<parallel>], iteration_bounds = array<i64: 2>, scalar_prefetch = 0 : i64, scratch_operands = 1 : i64, tpu.core_type = #tpu.core_type<tc>, window_params = [{transform_indices = @transform_0, window_bounds = array<i64: 1, 342, 128>}, {pipeline_mode = #tpu.pipeline_mode<synchronous>, transform_indices = @transform_1, window_bounds = array<i64: 4, 128, 512>}, {pipeline_mode = #tpu.pipeline_mode<synchronous>, transform_indices = @transform_2, window_bounds = array<i64: 1, 512>}, {transform_indices = @transform_3, window_bounds = array<i64: 1, 312, 512>}]} {
    %c0 = arith.constant 0 : index
    %c0_0 = arith.constant 0 : index
    %c0_1 = arith.constant 0 : index
    %0 = vector.load %arg1[%c0, %c0_0, %c0_1] : memref<1x342x128xbf16, #tpu.memory_space<vmem>>, vector<1x312x128xbf16>
    %1 = vector.shape_cast %0 : vector<1x312x128xbf16> to vector<312x128xbf16>
    %c0_2 = arith.constant 0 : index
    %c0_3 = arith.constant 0 : index
    %c0_4 = arith.constant 0 : index
    %2 = vector.load %arg2[%c0_2, %c0_3, %c0_4] : memref<4x128x512xbf16, #tpu.memory_space<vmem>>, vector<1x128x512xbf16>
    %3 = vector.shape_cast %2 : vector<1x128x512xbf16> to vector<128x512xbf16>
    %cst = arith.constant dense<0.000000e+00> : vector<312x512xf32>
    %4 = tpu.matmul %1, %3, %cst {dimension_numbers = #tpu.dot_dimension_numbers<[1], [0], [0], [1], [0, 0, 1, 1], [], []>} : vector<312x128xbf16>, vector<128x512xbf16>, vector<312x512xf32> -> vector<312x512xf32>
    %c0_5 = arith.constant 0 : index
    %c0_6 = arith.constant 0 : index
    %5 = vector.load %arg5[%c0_5, %c0_6] : memref<312x512xf32, #tpu.memory_space<vmem>>, vector<312x512xf32>
    tpu.vector_store %arg5[%c0_5, %c0_6], %4 {strides = array<i32>} : memref<312x512xf32, #tpu.memory_space<vmem>>, vector<312x512xf32>,
    %c0_7 = arith.constant 0 : index
    %c1 = arith.constant 1 : index
    %c0_8 = arith.constant 0 : index
    %6 = vector.load %arg1[%c0_7, %c1, %c0_8] : memref<1x342x128xbf16, #tpu.memory_space<vmem>>, vector<1x312x128xbf16>
    %7 = vector.shape_cast %6 : vector<1x312x128xbf16> to vector<312x128xbf16>
    %c1_9 = arith.constant 1 : index
    %c0_10 = arith.constant 0 : index
    %c0_11 = arith.constant 0 : index
    %8 = vector.load %arg2[%c1_9, %c0_10, %c0_11] : memref<4x128x512xbf16, #tpu.memory_space<vmem>>, vector<1x128x512xbf16>
    %9 = vector.shape_cast %8 : vector<1x128x512xbf16> to vector<128x512xbf16>
    %cst_12 = arith.constant dense<0.000000e+00> : vector<312x512xf32>
    %10 = tpu.matmul %7, %9, %cst_12 {dimension_numbers = #tpu.dot_dimension_numbers<[1], [0], [0], [1], [0, 0, 1, 1], [], []>} : vector<312x128xbf16>, vector<128x512xbf16>, vector<312x512xf32> -> vector<312x512xf32>
    %c0_13 = arith.constant 0 : index
    %c0_14 = arith.constant 0 : index
    %11 = vector.load %arg5[%c0_13, %c0_14] : memref<312x512xf32, #tpu.memory_space<vmem>>, vector<312x512xf32>
    %12 = arith.addf %11, %10 : vector<312x512xf32>
    %c0_15 = arith.constant 0 : index
    %c0_16 = arith.constant 0 : index
    %13 = vector.load %arg5[%c0_15, %c0_16] : memref<312x512xf32, #tpu.memory_space<vmem>>, vector<312x512xf32>
    tpu.vector_store %arg5[%c0_15, %c0_16], %12 {strides = array<i32>} : memref<312x512xf32, #tpu.memory_space<vmem>>, vector<312x512xf32>,
    %c0_17 = arith.constant 0 : index
    %c18 = arith.constant 18 : index
    %c0_18 = arith.constant 0 : index
    %14 = vector.load %arg1[%c0_17, %c18, %c0_18] : memref<1x342x128xbf16, #tpu.memory_space<vmem>>, vector<1x312x128xbf16>
    %15 = vector.shape_cast %14 : vector<1x312x128xbf16> to vector<312x128xbf16>
    %c2 = arith.constant 2 : index
    %c0_19 = arith.constant 0 : index
    %c0_20 = arith.constant 0 : index
    %16 = vector.load %arg2[%c2, %c0_19, %c0_20] : memref<4x128x512xbf16, #tpu.memory_space<vmem>>, vector<1x128x512xbf16>
    %17 = vector.shape_cast %16 : vector<1x128x512xbf16> to vector<128x512xbf16>
    %cst_21 = arith.constant dense<0.000000e+00> : vector<312x512xf32>
    %18 = tpu.matmul %15, %17, %cst_21 {dimension_numbers = #tpu.dot_dimension_numbers<[1], [0], [0], [1], [0, 0, 1, 1], [], []>} : vector<312x128xbf16>, vector<128x512xbf16>, vector<312x512xf32> -> vector<312x512xf32>
    %c0_22 = arith.constant 0 : index
    %c0_23 = arith.constant 0 : index
    %19 = vector.load %arg5[%c0_22, %c0_23] : memref<312x512xf32, #tpu.memory_space<vmem>>, vector<312x512xf32>
    %20 = arith.addf %19, %18 : vector<312x512xf32>
    %c0_24 = arith.constant 0 : index
    %c0_25 = arith.constant 0 : index
    %21 = vector.load %arg5[%c0_24, %c0_25] : memref<312x512xf32, #tpu.memory_space<vmem>>, vector<312x512xf32>
    tpu.vector_store %arg5[%c0_24, %c0_25], %20 {strides = array<i32>} : memref<312x512xf32, #tpu.memory_space<vmem>>, vector<312x512xf32>,
    %c0_26 = arith.constant 0 : index
    %c19 = arith.constant 19 : index
    %c0_27 = arith.constant 0 : index
    %22 = vector.load %arg1[%c0_26, %c19, %c0_27] : memref<1x342x128xbf16, #tpu.memory_space<vmem>>, vector<1x312x128xbf16>
    %23 = vector.shape_cast %22 : vector<1x312x128xbf16> to vector<312x128xbf16>
    %c3 = arith.constant 3 : index
    %c0_28 = arith.constant 0 : index
    %c0_29 = arith.constant 0 : index
    %24 = vector.load %arg2[%c3, %c0_28, %c0_29] : memref<4x128x512xbf16, #tpu.memory_space<vmem>>, vector<1x128x512xbf16>
    %25 = vector.shape_cast %24 : vector<1x128x512xbf16> to vector<128x512xbf16>
    %cst_30 = arith.constant dense<0.000000e+00> : vector<312x512xf32>
    %26 = tpu.matmul %23, %25, %cst_30 {dimension_numbers = #tpu.dot_dimension_numbers<[1], [0], [0], [1], [0, 0, 1, 1], [], []>} : vector<312x128xbf16>, vector<128x512xbf16>, vector<312x512xf32> -> vector<312x512xf32>
    %c0_31 = arith.constant 0 : index
    %c0_32 = arith.constant 0 : index
    %27 = vector.load %arg5[%c0_31, %c0_32] : memref<312x512xf32, #tpu.memory_space<vmem>>, vector<312x512xf32>
    %28 = arith.addf %27, %26 : vector<312x512xf32>
    %c0_33 = arith.constant 0 : index
    %c0_34 = arith.constant 0 : index
    %29 = vector.load %arg5[%c0_33, %c0_34] : memref<312x512xf32, #tpu.memory_space<vmem>>, vector<312x512xf32>
    tpu.vector_store %arg5[%c0_33, %c0_34], %28 {strides = array<i32>} : memref<312x512xf32, #tpu.memory_space<vmem>>, vector<312x512xf32>,
    %c0_35 = arith.constant 0 : index
    %c0_36 = arith.constant 0 : index
    %30 = vector.load %arg5[%c0_35, %c0_36] : memref<312x512xf32, #tpu.memory_space<vmem>>, vector<312x512xf32>
    %c0_37 = arith.constant 0 : index
    %c0_38 = arith.constant 0 : index
    %31 = vector.load %arg3[%c0_37, %c0_38] : memref<1x512xf32, #tpu.memory_space<vmem>>, vector<1x512xf32>
    %32 = vector.broadcast %31 : vector<1x512xf32> to vector<312x512xf32>
    %33 = arith.addf %30, %32 : vector<312x512xf32>
    %cst_39 = arith.constant 0.000000e+00 : f32
    %34 = vector.broadcast %cst_39 : f32 to vector<312x512xf32>
    %35 = arith.maximumf %33, %34 : vector<312x512xf32>
    %c0_40 = arith.constant 0 : index
    %c0_41 = arith.constant 0 : index
    %c0_42 = arith.constant 0 : index
    %36 = vector.load %arg4[%c0_40, %c0_41, %c0_42] : memref<1x312x512xf32, #tpu.memory_space<vmem>>, vector<1x312x512xf32>
    %37 = vector.shape_cast %36 : vector<1x312x512xf32> to vector<312x512xf32>
    %38 = vector.shape_cast %35 : vector<312x512xf32> to vector<1x312x512xf32>
    tpu.vector_store %arg4[%c0_40, %c0_41, %c0_42], %38 {strides = array<i32>} : memref<1x312x512xf32, #tpu.memory_space<vmem>>, vector<1x312x512xf32>,
    return
  }
  func.func @transform_0(%arg0: i32) -> (i32, i32, i32) {
    %c0_i32 = arith.constant 0 : i32
    %c0_i32_0 = arith.constant 0 : i32
    %c0_i32_1 = arith.constant 0 : i32
    return %arg0, %c0_i32, %c0_i32_0 : i32, i32, i32
  }
  func.func @transform_1(%arg0: i32) -> (i32, i32, i32) {
    %c0_i32 = arith.constant 0 : i32
    %c0_i32_0 = arith.constant 0 : i32
    %c0_i32_1 = arith.constant 0 : i32
    %c0_i32_2 = arith.constant 0 : i32
    return %c0_i32, %c0_i32_0, %c0_i32_1 : i32, i32, i32
  }
  func.func @transform_2(%arg0: i32) -> (i32, i32) {
    %c0_i32 = arith.constant 0 : i32
    %c0_i32_0 = arith.constant 0 : i32
    %c0_i32_1 = arith.constant 0 : i32
    return %c0_i32, %c0_i32_0 : i32, i32
  }
  func.func @transform_3(%arg0: i32) -> (i32, i32, i32) {
    %c0_i32 = arith.constant 0 : i32
    %c0_i32_0 = arith.constant 0 : i32
    %c0_i32_1 = arith.constant 0 : i32
    return %arg0, %c0_i32, %c0_i32_0 : i32, i32, i32
  }
}

</mosaic_0001>

<llo_original>
// kernel: tile.8
$region0: #{tile.8}
  #allocation0 [shape = 's32[1]{0}', space=sflag, size = 0x4, scoped, tag = 'scoped memory for tile.8']
  %s0 = inlined_call_operand.vmem [shape: f32[128], index: 0, kind: input, shape index: {}]
  %s1 = inlined_call_operand.vmem [shape: f32[4,128], index: 1, kind: output, shape index: {}]
  // Predicated region
  $region2: #{tile.8} parent=0 // pred_check
    _
  $region3: #{tile.8} parent=0 // pred_check_branch
    %3 = sbr.rel (0) target = $region5
  $region4: #{tile.8} parent=0 // pred_region
    _
  $region5: #{tile.8} parent=0 // pred_fallthru
    _
  %v4 = vld [vmem:[%s0] ss:$0 sm:$0xff]
  %5 = vst [vmem:[%s1] sm:$0xf] %v4

</llo_original>
